<compile_context>
chip_gen: v6e
topology: v6e:2x2x1
jax: 0.10.0
libtpu: 0.0.40
codegen_flags: <defaults>
</compile_context>

<pallas_src>
import functools

import jax
import jax.numpy as jnp
from jax.experimental import pallas as pl
from jax.experimental.pallas import tpu as pltpu

_DEFAULT_TILE_BYTES = 4 * 1024 * 1024      # ~4 MiB per tile regardless of dtype
_VMEM_LIMIT_BYTES = 32 * 1024 * 1024       # room for double-buffered in+out tiles
_SMALL_FASTPATH_BYTES = 256 * 1024         # below this, plain JAX (XLA fusion) wins


def _final_layer_kernel(x_ref, o_ref, *, inv_norm, bias):
    # Elementwise hot path: out = x * (1/norm) + bias, computed in f32.
    # inv_norm / bias are Python floats -> scalar immediates on the VPU.
    x = x_ref[...].astype(jnp.float32)
    o_ref[...] = (x * inv_norm + bias).astype(o_ref.dtype)


def final_layer(
    in_tensor: jax.Array,
    norm: float = 1.0,
    bias: float = -5.0,
    *,
    min_pallas_bytes: int = _SMALL_FASTPATH_BYTES,
    tile_bytes: int = _DEFAULT_TILE_BYTES,
) -> jax.Array:
    """Pallas implementation of FinalLayer.forward.

    Args:
        in_tensor: tensor whose trailing dims (beyond the first two) have total
            size 1, e.g. shape (N, C, 1, 1) or (N, C).
        norm: inverse temperature T^{-1}; must be a nonzero Python/numpy scalar
            (it is baked in at trace time).
        bias: constant logit-space shift (Python/numpy scalar).
        min_pallas_bytes: below this total byte count, use a plain-JAX fast
            path (XLA will fuse it into the producer) instead of the kernel.
        tile_bytes: target per-tile DMA size for the Pallas path.

    Returns:
        (N, C) tensor: in_tensor.reshape(N, C) / norm + bias
    """
    norm = float(norm)  # traced/jnp scalars are not supported for norm/bias
    bias = float(bias)
    assert norm != 0.0, "Norm 0 is not supported."
    inv_norm = 1.0 / norm

    n, c = in_tensor.shape[:2]
    # Equivalent of torch .view(*shape[:2]): trailing dims must multiply to 1.
    x2d = in_tensor.reshape(n, c)
    dtype = x2d.dtype
    itemsize = jnp.dtype(dtype).itemsize
    total_bytes = n * c * itemsize

    # Fast path: tiny logit tensors.  The pallas_call fixed cost (grid setup,
    # >=1 DMA round trip) dominates for these; a fused XLA epilogue is free.
    if total_bytes < min_pallas_bytes:
        return (x2d.astype(jnp.float32) * inv_norm + bias).astype(dtype)

    # --- Pallas path: tile (N, C) directly, lane dim = full C. ---
    # dtype-aware sublane packing: 8 rows for 4-byte, 16 for 2-byte, 32 for
    # 1-byte elements, so each grid step moves ~tile_bytes regardless of dtype.
    sublane = max(8, 32 // itemsize)
    row_bytes = c * itemsize
    tile_n = max(sublane, (tile_bytes // max(row_bytes, 1)) // sublane * sublane)
    if tile_n >= n:
        # Whole array in one block: block dims equal to full array dims always
        # satisfy the tiling constraints.
        tile_n = n
    grid = (pl.cdiv(n, tile_n),)

    kernel = functools.partial(_final_layer_kernel, inv_norm=inv_norm, bias=bias)

    return pl.pallas_call(
        kernel,
        out_shape=jax.ShapeDtypeStruct((n, c), dtype),
        grid=grid,
        in_specs=[pl.BlockSpec((tile_n, c), lambda i: (i, 0))],
        out_specs=pl.BlockSpec((tile_n, c), lambda i: (i, 0)),
        compiler_params=pltpu.CompilerParams(
            dimension_semantics=("parallel",),
            vmem_limit_bytes=_VMEM_LIMIT_BYTES,
        ),
    )(x2d)


if __name__ == "__main__":
    key = jax.random.PRNGKey(0)
    k1, k2, k3, k4 = jax.random.split(key, 4)
    norm, bias = 2.0, -5.0

    # Case 1: the shape FinalLayer typically sees — tiny (N, C, 1, 1) logits.
    # Takes the plain-JAX fast path.
    N, C = 2, 4
    x = jax.random.normal(k1, (N, C, 1, 1), dtype=jnp.float32)
    out = jax.block_until_ready(final_layer(x, norm=norm, bias=bias))
    ref = x.reshape(N, C) / norm + bias
    assert out.shape == (N, C)
    assert jnp.allclose(out, ref, atol=1e-6, rtol=1e-6), "mismatch (fast path)"

    # Case 2: force the Pallas kernel (single full-array block, C not a
    # multiple of 128 — last block dim equals full dim so no padding needed).
    N2, C2 = 16, 500
    x2 = jax.random.normal(k2, (N2, C2, 1, 1), dtype=jnp.float32)
    out2 = jax.block_until_ready(
        final_layer(x2, norm=norm, bias=bias, min_pallas_bytes=0)
    )
    ref2 = x2.reshape(N2, C2) / norm + bias
    assert out2.shape == (N2, C2)
    assert jnp.allclose(out2, ref2, atol=1e-6, rtol=1e-6), "mismatch (single block)"

    # Case 3: force a multi-step tiled grid with a ragged final row block
    # (tile_n = 16 rows, N = 44 -> grid of 3 with a partial last block).
    N3, C3 = 44, 257
    x3 = jax.random.normal(k3, (N3, C3, 1, 1), dtype=jnp.float32)
    out3 = jax.block_until_ready(
        final_layer(
            x3, norm=norm, bias=bias,
            min_pallas_bytes=0, tile_bytes=16 * C3 * 4,
        )
    )
    ref3 = x3.reshape(N3, C3) / norm + bias
    assert out3.shape == (N3, C3)
    assert jnp.allclose(out3, ref3, atol=1e-6, rtol=1e-6), "mismatch (tiled/ragged)"

    # Case 4: bf16 input through the Pallas path (dtype-aware sublane packing).
    N4, C4 = 32, 300
    x4 = jax.random.normal(k4, (N4, C4, 1, 1), dtype=jnp.bfloat16)
    out4 = jax.block_until_ready(
        final_layer(x4, norm=norm, bias=bias, min_pallas_bytes=0)
    )
    ref4 = (x4.reshape(N4, C4).astype(jnp.float32) / norm + bias).astype(jnp.bfloat16)
    assert out4.shape == (N4, C4)
    assert jnp.allclose(
        out4.astype(jnp.float32), ref4.astype(jnp.float32), atol=1e-2, rtol=1e-2
    ), "mismatch (bf16)"

    print("KERNEL_OK")
</pallas_src>

<mosaic_0001>
module attributes {stable_mosaic.version = 11 : i64} {
  func.func @_final_layer_kernel(%arg0: i32, %arg1: memref<16x500xf32, #tpu.memory_space<vmem>>, %arg2: memref<16x500xf32, #tpu.memory_space<vmem>>) attributes {dimension_semantics = [#tpu.dimension_semantics<parallel>], iteration_bounds = array<i64: 1>, scalar_prefetch = 0 : i64, scratch_operands = 0 : i64, tpu.core_type = #tpu.core_type<tc>, window_params = [{transform_indices = @transform_0, window_bounds = array<i64: 16, 500>}, {transform_indices = @transform_1, window_bounds = array<i64: 16, 500>}]} {
    %c0 = arith.constant 0 : index
    %c0_0 = arith.constant 0 : index
    %0 = vector.load %arg1[%c0, %c0_0] : memref<16x500xf32, #tpu.memory_space<vmem>>, vector<16x500xf32>
    %cst = arith.constant 5.000000e-01 : f32
    %1 = vector.broadcast %cst : f32 to vector<16x500xf32>
    %2 = arith.mulf %0, %1 : vector<16x500xf32>
    %cst_1 = arith.constant -5.000000e+00 : f32
    %3 = vector.broadcast %cst_1 : f32 to vector<16x500xf32>
    %4 = arith.addf %2, %3 : vector<16x500xf32>
    %c0_2 = arith.constant 0 : index
    %c0_3 = arith.constant 0 : index
    %5 = vector.load %arg2[%c0_2, %c0_3] : memref<16x500xf32, #tpu.memory_space<vmem>>, vector<16x500xf32>
    tpu.vector_store %arg2[%c0_2, %c0_3], %4 {strides = array<i32>} : memref<16x500xf32, #tpu.memory_space<vmem>>, vector<16x500xf32>,
    return
  }
  func.func @transform_0(%arg0: i32) -> (i32, i32) {
    %c0_i32 = arith.constant 0 : i32
    %c0_i32_0 = arith.constant 0 : i32
    return %arg0, %c0_i32 : i32, i32
  }
  func.func @transform_1(%arg0: i32) -> (i32, i32) {
    %c0_i32 = arith.constant 0 : i32
    %c0_i32_0 = arith.constant 0 : i32
    return %arg0, %c0_i32 : i32, i32
  }
}

</mosaic_0001>

<llo_original>
// kernel: tpu_custom_call.1
$region0: #{tpu_custom_call.1}
  #allocation0 [shape = 'u32[]', space=smem, size = 0x4, offset = 0x4, fixed_abs, tag = 'smem constant byte address 0x4 - core index']
  #allocation1 [shape = 'u32[144,128]{1,0:T(1,128)}', space=vmem, size = 0x12000, scoped, tag = 'internal scratch']
  %s0 = inlined_call_operand.hbm [shape: f32[16,500], index: 0, kind: input, shape index: {}]
  %s1 = inlined_call_operand.hbm [shape: f32[16,500], index: 1, kind: output, shape index: {}]
  %s2 = sld [smem:[#allocation0]]
  $region18: #{tpu_custom_call.1} parent=0
    _
  %s4 = ssub.s32 1, %s2
  %s5 = scalar_select 0, %s4, %s2
  $region1: #{tpu_custom_call.1} parent=0
    #allocation2 [shape = 'u8[32768]{0}', space=vmem, size = 0x8000, scoped, tag = 'input window, operand 0, single buffered']
    #allocation3 [shape = 's32[1]{0}', space=sflag, size = 0x4, scoped, tag = 'scoped memory for tpu_custom_call.1']
    #allocation4 [shape = 's32[1]{0}', space=sflag, size = 0x4, scoped, tag = 'scoped memory for tpu_custom_call.1']
    #allocation5 [shape = 'u8[32768]{0}', space=vmem, size = 0x8000, scoped, tag = 'output window, operand 0, single buffered']
    %6 = vsyncpa [#allocation3], 0
    %7 = vsyncpa [#allocation4], 0
    // Predicated region
    $region2: #{tpu_custom_call.1} parent=1 // pred_check
      _
    $region3: #{tpu_custom_call.1} parent=1 // pred_check_branch
      %9 = sbr.rel (0) target = $region5
    $region4: #{tpu_custom_call.1} parent=1 // pred_region
      %s11 = ssub.s32 1024, 1024
      %12 = vsyncadd [#allocation3], %s11
      %s13 = sshll.u32 [#allocation2], 4
      %s14 = int_to_ptr.vmem [resolvable:$true] %s13
      %19 = dma.hbm_to_vmem [thread:$0]  %s0, 1024, %s14, [#allocation3], 512, 512, 32
    $region5: #{tpu_custom_call.1} parent=1 // pred_fallthru
      _
    // Predicated region
    $region6: #{tpu_custom_call.1} parent=1 // pred_check
      _
    $region7: #{tpu_custom_call.1} parent=1 // pred_check_branch
      %21 = sbr.rel (0) target = $region9
    $region8: #{tpu_custom_call.1} parent=1 // pred_region
      %22 = dma.done [#allocation3], 1024
    $region9: #{tpu_custom_call.1} parent=1 // pred_fallthru
      _
    %v23 = vld [vmem:[#allocation2] sm:$0xff]
    %v24 = vld [vmem:[#allocation2 + $0x8] sm:$0xff]
    %v25 = vld [vmem:[#allocation2 + $0x10] sm:$0xff]
    %v26 = vld [vmem:[#allocation2 + $0x18] sm:$0xff]
    %v27 = vld [vmem:[#allocation2 + $0x20] sm:$0xff]
    %v28 = vld [vmem:[#allocation2 + $0x28] sm:$0xff]
    %v29 = vld [vmem:[#allocation2 + $0x30] sm:$0xff]
    %v30 = vld [vmem:[#allocation2 + $0x38] sm:$0xff]
    %v31 = vmul.f32 %v23, 0.5
    %v32 = vmul.f32 %v24, 0.5
    %v33 = vmul.f32 %v25, 0.5
    %v34 = vmul.f32 %v26, 0.5
    %v35 = vmul.f32 %v27, 0.5
    %v36 = vmul.f32 %v28, 0.5
    %v37 = vmul.f32 %v29, 0.5
    %v38 = vmul.f32 %v30, 0.5
    %v39 = vadd.f32 %v31, -5.0
    %v40 = vadd.f32 %v32, -5.0
    %v41 = vadd.f32 %v33, -5.0
    %v42 = vadd.f32 %v34, -5.0
    %v43 = vadd.f32 %v35, -5.0
    %v44 = vadd.f32 %v36, -5.0
    %v45 = vadd.f32 %v37, -5.0
    %v46 = vadd.f32 %v38, -5.0
    %47 = vst [vmem:[#allocation5] sm:$0xff] %v39
    %48 = vst [vmem:[#allocation5 + $0x8] sm:$0xff] %v40
    %49 = vst [vmem:[#allocation5 + $0x10] sm:$0xff] %v41
    %vm50 = vcmask 949248
    %51 = vst.msk [vmem:[#allocation5 + $0x18] sm:$0xff] %vm50, %v42
    %52 = vst [vmem:[#allocation5 + $0x20] sm:$0xff] %v43
    %53 = vst [vmem:[#allocation5 + $0x28] sm:$0xff] %v44
    %54 = vst [vmem:[#allocation5 + $0x30] sm:$0xff] %v45
    %55 = vst.msk [vmem:[#allocation5 + $0x38] sm:$0xff] %vm50, %v46
    // Predicated region
    $region10: #{tpu_custom_call.1} parent=1 // pred_check
      _
    $region11: #{tpu_custom_call.1} parent=1 // pred_check_branch
      %57 = sbr.rel (0) target = $region13
    $region12: #{tpu_custom_call.1} parent=1 // pred_region
      %s59 = ssub.s32 1024, 1024
      %60 = vsyncadd [#allocation4], %s59
      %s61 = sshll.u32 [#allocation5], 4
      %s62 = int_to_ptr.vmem [resolvable:$true] %s61
      %67 = dma.vmem_to_hbm [thread:$0]  %s62, 1024, %s1, [#allocation4], 512, 512, 32
    $region13: #{tpu_custom_call.1} parent=1 // pred_fallthru
      _
    // Predicated region
    $region14: #{tpu_custom_call.1} parent=1 // pred_check
      _
    $region15: #{tpu_custom_call.1} parent=1 // pred_check_branch
      %69 = sbr.rel (0) target = $region17
    $region16: #{tpu_custom_call.1} parent=1 // pred_region
      %70 = dma.done [#allocation4], 1024
    $region17: #{tpu_custom_call.1} parent=1 // pred_fallthru
      _
    %71 = vsyncpa [#allocation3], 1
    %72 = vsyncpa [#allocation4], 1

</llo_original>
